<compile_context>
chip_gen: v7x
topology: tpu7x:2x2x1
jax: 0.10.0
libtpu: 0.0.40
codegen_flags: <defaults>
</compile_context>

<pallas_src>
import jax
import jax.numpy as jnp
from jax.experimental import pallas as pl
from jax.experimental.pallas import tpu as pltpu

_LANE = 128


# ----------------------------------------------------------------------------
# Small helpers (all Python / trace-time).
# ----------------------------------------------------------------------------
def _cdiv(a: int, b: int) -> int:
    return -(-a // b)


def _round_up(a: int, b: int) -> int:
    return _cdiv(a, b) * b


def _packed_sublane(itemsize: int) -> int:
    """Native sublane tile height for the dtype: 8 (f32), 16 (bf16), 32 (int8/fp8)."""
    return 8 * max(1, 4 // max(1, itemsize))


def _vmem_capacity_bytes() -> int:
    """Per-TensorCore VMEM capacity, generation-aware."""
    try:
        cap = int(pltpu.get_tpu_info().vmem_capacity_bytes)
        if cap > 0:
            return cap
    except Exception:
        pass
    try:
        # v7x has 64 MiB/TC; v4/v5e/v5p/v6e have 128 MiB/TC.
        kind = jax.devices()[0].device_kind.lower()
        return (64 if "v7" in kind else 128) * 1024 * 1024
    except Exception:
        return 64 * 1024 * 1024  # conservative fallback


def _block_budget_bytes():
    """(per-block VMEM footprint budget, total VMEM capacity)."""
    cap = _vmem_capacity_bytes()
    # ~40% of VMEM for pipeline residency, split across ~6 block-equivalents
    # (2x double-buffered input + 2x output + ~2 blocks of f32 compute temps).
    # v5e/v6e -> ~8.5 MiB/block (S~4096 for C=4 f32); v7x -> ~4.3 MiB (S~2080).
    return ((2 * cap) // 5) // 6, cap


def _largest_divisor_at_most(n: int, k: int) -> int:
    for d in range(min(n, max(1, k)), 0, -1):
        if n % d == 0:
            return d
    return 1


def _cast_out(acc_f32, dtype):
    if jnp.issubdtype(dtype, jnp.integer):
        acc_f32 = jnp.round(acc_f32)
    return acc_f32.astype(dtype)


# ----------------------------------------------------------------------------
# Kernels.
# ----------------------------------------------------------------------------
def _color_matrix_kernel_packed(m_ref, x_ref, o_ref):
    # m_ref:       (B*C*C,) f32 in SMEM (whole table, resident for all steps)
    # x_ref/o_ref: (Kb, C, S, 128) sublane-dense pixel block
    Kb, C = x_ref.shape[0], x_ref.shape[1]
    b_total = m_ref.shape[0] // (C * C)
    bb = pl.program_id(0)
    for kb in range(Kb):
        # Clamp keeps the SMEM read in bounds for a partial last batch block;
        # the corresponding output rows are masked on writeback anyway.
        b = jnp.minimum(bb * Kb + kb, b_total - 1)
        base = b * (C * C)
        accs = [None] * C
        for ci in range(C):                         # load each input channel once
            xc = x_ref[kb, ci].astype(jnp.float32)  # (S, 128)
            for co in range(C):                     # accumulate into C outputs
                term = m_ref[base + co * C + ci] * xc
                accs[co] = term if accs[co] is None else accs[co] + term
        for co in range(C):
            o_ref[kb, co] = _cast_out(accs[co], o_ref.dtype)


def _color_matrix_kernel_flat(m_ref, x_ref, o_ref):
    # m_ref: (B*C*C,) f32 in SMEM.  x_ref/o_ref: (C, T) pixel block (ragged HW).
    C = x_ref.shape[0]
    base = pl.program_id(0) * (C * C)
    accs = [None] * C
    for ci in range(C):
        xc = x_ref[ci:ci + 1, :].astype(jnp.float32)   # (1, T)
        for co in range(C):
            term = m_ref[base + co * C + ci] * xc
            accs[co] = term if accs[co] is None else accs[co] + term
    for co in range(C):
        o_ref[co:co + 1, :] = _cast_out(accs[co], o_ref.dtype)


# ----------------------------------------------------------------------------
# Dispatch paths.
# ----------------------------------------------------------------------------
def _call_packed(x, m_flat, tile_rows):
    """Fast path: H*W % 128 == 0, sublane-dense (B, C, N, 128) layout."""
    B, C, H, W = x.shape
    HW = H * W
    N = HW // _LANE
    itemsize = x.dtype.itemsize
    sub = _packed_sublane(itemsize)
    block_budget, vmem_cap = _block_budget_bytes()

    row_fp = C * _LANE * itemsize                              # bytes per all-channel row
    per_batch_fp = C * _round_up(N, sub) * _LANE * itemsize    # VMEM footprint of one image

    if 2 * per_batch_fp <= block_budget:
        # Small image: take the whole pixel extent per step and pack several
        # batch elements so one grid step still moves a decent chunk of HBM.
        S = N
        kb = max(1, min(B, 32, block_budget // per_batch_fp))  # 32 caps kernel unroll
        Kb = _largest_divisor_at_most(B, kb)                   # avoid partial batch blocks
    else:
        Kb = 1
        s = min(block_budget // row_fp, (8 << 20) // row_fp)   # cap payload at ~8 MiB
        if tile_rows is not None:
            s = min(s, int(tile_rows))
        s = max(sub, s)
        S = N if s >= N else max(sub, (s // sub) * sub)

    nb, nt = _cdiv(B, Kb), _cdiv(N, S)
    if nb * nt == 1:
        # Keep >= 2 grid steps: DMA/compute overlap, and something to shard on
        # the second TensorCore for v7x megacore.
        if B >= 2:
            Kb = _largest_divisor_at_most(B, (B + 1) // 2)
        elif N >= 2 * sub:
            S = sub * _cdiv(_cdiv(N, 2), sub)
        nb, nt = _cdiv(B, Kb), _cdiv(N, S)

    x_t = x.reshape(B, C, N, _LANE)                            # free (contiguous)

    blk_fp = Kb * C * _round_up(S, sub) * _LANE * itemsize
    tmp_fp = Kb * C * _round_up(S, 8) * _LANE * 4              # f32 accumulators (upper bound)
    resident = 2 * (blk_fp + blk_fp) + tmp_fp                  # double-buffered in + out + temps
    vmem_limit = min(vmem_cap, max(32 << 20, resident + resident // 2 + (2 << 20)))

    cost = pl.CostEstimate(
        flops=2 * B * C * C * HW, transcendentals=0,
        bytes_accessed=2 * B * C * HW * itemsize + B * C * C * 4)

    out_t = pl.pallas_call(
        _color_matrix_kernel_packed,
        out_shape=jax.ShapeDtypeStruct((B, C, N, _LANE), x.dtype),
        grid_spec=pltpu.PrefetchScalarGridSpec(
            num_scalar_prefetch=0,
            grid=(nb, nt),
            in_specs=[
                pl.BlockSpec(memory_space=pltpu.MemorySpace.SMEM),
                pl.BlockSpec((Kb, C, S, _LANE), lambda b, t: (b, 0, t, 0)),
            ],
            out_specs=pl.BlockSpec((Kb, C, S, _LANE), lambda b, t: (b, 0, t, 0)),
        ),
        compiler_params=pltpu.CompilerParams(
            dimension_semantics=("parallel", "parallel"),
            vmem_limit_bytes=int(vmem_limit)),
        cost_estimate=cost,
    )(m_flat, x_t)
    return out_t.reshape(B, C, H, W)


def _call_flat(x, m_flat, tile_pixels):
    """Ragged path: H*W % 128 != 0; tile (B, C, HW) directly, no pad/slice."""
    B, C, H, W = x.shape
    HW = H * W
    itemsize = x.dtype.itemsize
    sub = _packed_sublane(itemsize)
    block_budget, vmem_cap = _block_budget_bytes()

    cpad = _round_up(C, sub)                                   # sublane-padded channel count
    grp_fp = cpad * _LANE * itemsize                           # footprint per 128 pixels
    groups = max(1, min(block_budget // grp_fp, (8 << 20) // (C * _LANE * itemsize)))
    T = groups * _LANE
    if tile_pixels is not None:
        T = max(_LANE, (min(T, int(tile_pixels)) // _LANE) * _LANE)
    if T >= HW:
        T = HW                                                 # full-extent block (any HW is legal)
    nt = _cdiv(HW, T)                                          # partial last block is masked

    x_f = x.reshape(B, C, HW)                                  # free (contiguous)

    blk_fp = cpad * _round_up(T, _LANE) * itemsize
    tmp_fp = cpad * _round_up(T, _LANE) * 4
    resident = 2 * (blk_fp + blk_fp) + tmp_fp
    vmem_limit = min(vmem_cap, max(32 << 20, resident + resident // 2 + (2 << 20)))

    cost = pl.CostEstimate(
        flops=2 * B * C * C * HW, transcendentals=0,
        bytes_accessed=2 * B * C * HW * itemsize + B * C * C * 4)

    out_f = pl.pallas_call(
        _color_matrix_kernel_flat,
        out_shape=jax.ShapeDtypeStruct((B, C, HW), x.dtype),
        grid_spec=pltpu.PrefetchScalarGridSpec(
            num_scalar_prefetch=0,
            grid=(B, nt),
            in_specs=[
                pl.BlockSpec(memory_space=pltpu.MemorySpace.SMEM),
                pl.BlockSpec((None, C, T), lambda b, t: (b, 0, t)),
            ],
            out_specs=pl.BlockSpec((None, C, T), lambda b, t: (b, 0, t)),
        ),
        compiler_params=pltpu.CompilerParams(
            dimension_semantics=("parallel", "parallel"),
            vmem_limit_bytes=int(vmem_limit)),
        cost_estimate=cost,
    )(m_flat, x_f)
    return out_f.reshape(B, C, H, W)


# ----------------------------------------------------------------------------
# Public wrapper (ColorMatrix.forward).
# ----------------------------------------------------------------------------
def color_matrix(x: jax.Array, matrix: jax.Array, *, tile_rows=None) -> jax.Array:
    """Apply a per-instance color matrix to NCHW images.

    Args:
      x:      (B, C, H, W) image batch.
      matrix: (B, C, C) per-instance color matrices, or (C, C) broadcast to
              every instance (the module's default-matrix behaviour).
      tile_rows: optional override of the pixel-tile height (rows of 128 lanes).
    Returns:
      (B, C, H, W) with out[b] = matrix[b] @ x[b].reshape(C, H*W), reshaped back.
    """
    B, C, H, W = x.shape
    if matrix is None:
        raise ValueError("ColorMatrix: a color matrix is required (module default is None).")
    matrix = jnp.asarray(matrix)
    if matrix.ndim == 2:
        assert matrix.shape == (C, C), "Color matrix can only be applied to RGB images"
        matrix = jnp.broadcast_to(matrix, (B, C, C))
    else:
        matrix = matrix.reshape(B, C, C)   # mirrors torch .view(B, C, C)

    # The unrolled scalar-FMA kernel targets RGB(A)-like channel counts; for
    # large C (or an SMEM table that would be unreasonably big) fall back to XLA.
    if C > 8 or B * C * C * 4 > 256 * 1024:
        out = jnp.einsum("boc,bchw->bohw",
                         matrix.astype(jnp.float32), x.astype(jnp.float32))
        return _cast_out(out, x.dtype)

    m_flat = matrix.astype(jnp.float32).reshape(B * C * C)     # -> SMEM scalar table

    if (H * W) % _LANE == 0:
        return _call_packed(x, m_flat, tile_rows)
    # Ragged H*W: no wrapper-side pad / trailing slice HBM round trips.
    return _call_flat(x, m_flat, None if tile_rows is None else int(tile_rows) * _LANE)


# ----------------------------------------------------------------------------
# Self-test.
# ----------------------------------------------------------------------------
if __name__ == "__main__":
    key = jax.random.PRNGKey(0)
    k1, k2, k3, k4, k5, k6 = jax.random.split(key, 6)

    # 1) Module-sized case: f32, 16x16 (HW multiple of 128) -> packed path with
    #    small-image batch packing.
    B, C, H, W = 2, 4, 16, 16
    x = jax.random.normal(k1, (B, C, H, W), dtype=jnp.float32)
    matrix = jax.random.normal(k2, (B, C, C), dtype=jnp.float32)
    out = jax.block_until_ready(color_matrix(x, matrix))
    ref = jnp.einsum("boc,bchw->bohw", matrix, x)
    assert out.shape == (B, C, H, W)
    assert jnp.allclose(out, ref, atol=1e-5, rtol=1e-5), "f32 packed path mismatch"

    # 2) Ragged spatial size (HW % 128 != 0), RGB (C=3) -> flat path, no pad/slice.
    B2, C2, H2, W2 = 2, 3, 15, 9
    x2 = jax.random.normal(k3, (B2, C2, H2, W2), dtype=jnp.float32)
    m2 = jax.random.normal(k4, (B2, C2, C2), dtype=jnp.float32)
    out2 = jax.block_until_ready(color_matrix(x2, m2))
    ref2 = jnp.einsum("boc,bchw->bohw", m2, x2)
    assert out2.shape == (B2, C2, H2, W2)
    assert jnp.allclose(out2, ref2, atol=1e-5, rtol=1e-5), "ragged flat path mismatch"

    # 3) bf16 input: dtype-aware sublane alignment, f32 accumulation, bf16 store.
    x3 = jax.random.normal(k5, (2, 4, 32, 32), dtype=jnp.float32).astype(jnp.bfloat16)
    m3 = jax.random.normal(k6, (2, 4, 4), dtype=jnp.float32)
    out3 = jax.block_until_ready(color_matrix(x3, m3))
    ref3 = jnp.einsum("boc,bchw->bohw", m3, x3.astype(jnp.float32))
    assert jnp.allclose(out3.astype(jnp.float32), ref3, atol=5e-2, rtol=5e-2), \
        "bf16 packed path mismatch"

    print("KERNEL_OK")
</pallas_src>

<mosaic_0001>
module attributes {stable_mosaic.version = 11 : i64} {
  func.func @_color_matrix_kernel_packed(%arg0: i32, %arg1: i32, %arg2: memref<32xf32, #tpu.memory_space<smem>>, %arg3: memref<1x4x2x128xf32, #tpu.memory_space<vmem>>, %arg4: memref<1x4x2x128xf32, #tpu.memory_space<vmem>>) attributes {dimension_semantics = [#tpu.dimension_semantics<parallel>, #tpu.dimension_semantics<parallel>], iteration_bounds = array<i64: 2, 1>, scalar_prefetch = 0 : i64, scratch_operands = 0 : i64, tpu.core_type = #tpu.core_type<tc>, window_params = [{transform_indices = @transform_0, window_bounds = array<i64: 32>}, {transform_indices = @transform_1, window_bounds = array<i64: 1, 4, 2, 128>}, {transform_indices = @transform_2, window_bounds = array<i64: 1, 4, 2, 128>}]} {
    %c1_i32 = arith.constant 1 : i32
    %0 = arith.muli %arg0, %c1_i32 : i32
    %c0_i32 = arith.constant 0 : i32
    %1 = arith.addi %0, %c0_i32 : i32
    %c1_i32_0 = arith.constant 1 : i32
    %2 = arith.minsi %1, %c1_i32_0 : i32
    %c16_i32 = arith.constant 16 : i32
    %3 = arith.muli %2, %c16_i32 : i32
    %c0 = arith.constant 0 : index
    %c0_1 = arith.constant 0 : index
    %c0_2 = arith.constant 0 : index
    %c0_3 = arith.constant 0 : index
    %4 = vector.load %arg3[%c0, %c0_1, %c0_2, %c0_3] : memref<1x4x2x128xf32, #tpu.memory_space<vmem>>, vector<1x1x2x128xf32>
    %5 = vector.shape_cast %4 : vector<1x1x2x128xf32> to vector<2x128xf32>
    %c0_i32_4 = arith.constant 0 : i32
    %6 = arith.addi %3, %c0_i32_4 : i32
    %c0_i32_5 = arith.constant 0 : i32
    %7 = arith.addi %6, %c0_i32_5 : i32
    %8 = arith.index_cast %7 : i32 to index
    %9 = memref.load %arg2[%8] : memref<32xf32, #tpu.memory_space<smem>>
    %10 = vector.broadcast %9 : f32 to vector<2x128xf32>
    %11 = arith.mulf %10, %5 : vector<2x128xf32>
    %c4_i32 = arith.constant 4 : i32
    %12 = arith.addi %3, %c4_i32 : i32
    %c0_i32_6 = arith.constant 0 : i32
    %13 = arith.addi %12, %c0_i32_6 : i32
    %14 = arith.index_cast %13 : i32 to index
    %15 = memref.load %arg2[%14] : memref<32xf32, #tpu.memory_space<smem>>
    %16 = vector.broadcast %15 : f32 to vector<2x128xf32>
    %17 = arith.mulf %16, %5 : vector<2x128xf32>
    %c8_i32 = arith.constant 8 : i32
    %18 = arith.addi %3, %c8_i32 : i32
    %c0_i32_7 = arith.constant 0 : i32
    %19 = arith.addi %18, %c0_i32_7 : i32
    %20 = arith.index_cast %19 : i32 to index
    %21 = memref.load %arg2[%20] : memref<32xf32, #tpu.memory_space<smem>>
    %22 = vector.broadcast %21 : f32 to vector<2x128xf32>
    %23 = arith.mulf %22, %5 : vector<2x128xf32>
    %c12_i32 = arith.constant 12 : i32
    %24 = arith.addi %3, %c12_i32 : i32
    %c0_i32_8 = arith.constant 0 : i32
    %25 = arith.addi %24, %c0_i32_8 : i32
    %26 = arith.index_cast %25 : i32 to index
    %27 = memref.load %arg2[%26] : memref<32xf32, #tpu.memory_space<smem>>
    %28 = vector.broadcast %27 : f32 to vector<2x128xf32>
    %29 = arith.mulf %28, %5 : vector<2x128xf32>
    %c0_9 = arith.constant 0 : index
    %c1 = arith.constant 1 : index
    %c0_10 = arith.constant 0 : index
    %c0_11 = arith.constant 0 : index
    %30 = vector.load %arg3[%c0_9, %c1, %c0_10, %c0_11] : memref<1x4x2x128xf32, #tpu.memory_space<vmem>>, vector<1x1x2x128xf32>
    %31 = vector.shape_cast %30 : vector<1x1x2x128xf32> to vector<2x128xf32>
    %c0_i32_12 = arith.constant 0 : i32
    %32 = arith.addi %3, %c0_i32_12 : i32
    %c1_i32_13 = arith.constant 1 : i32
    %33 = arith.addi %32, %c1_i32_13 : i32
    %34 = arith.index_cast %33 : i32 to index
    %35 = memref.load %arg2[%34] : memref<32xf32, #tpu.memory_space<smem>>
    %36 = vector.broadcast %35 : f32 to vector<2x128xf32>
    %37 = arith.mulf %36, %31 : vector<2x128xf32>
    %38 = arith.addf %11, %37 : vector<2x128xf32>
    %c4_i32_14 = arith.constant 4 : i32
    %39 = arith.addi %3, %c4_i32_14 : i32
    %c1_i32_15 = arith.constant 1 : i32
    %40 = arith.addi %39, %c1_i32_15 : i32
    %41 = arith.index_cast %40 : i32 to index
    %42 = memref.load %arg2[%41] : memref<32xf32, #tpu.memory_space<smem>>
    %43 = vector.broadcast %42 : f32 to vector<2x128xf32>
    %44 = arith.mulf %43, %31 : vector<2x128xf32>
    %45 = arith.addf %17, %44 : vector<2x128xf32>
    %c8_i32_16 = arith.constant 8 : i32
    %46 = arith.addi %3, %c8_i32_16 : i32
    %c1_i32_17 = arith.constant 1 : i32
    %47 = arith.addi %46, %c1_i32_17 : i32
    %48 = arith.index_cast %47 : i32 to index
    %49 = memref.load %arg2[%48] : memref<32xf32, #tpu.memory_space<smem>>
    %50 = vector.broadcast %49 : f32 to vector<2x128xf32>
    %51 = arith.mulf %50, %31 : vector<2x128xf32>
    %52 = arith.addf %23, %51 : vector<2x128xf32>
    %c12_i32_18 = arith.constant 12 : i32
    %53 = arith.addi %3, %c12_i32_18 : i32
    %c1_i32_19 = arith.constant 1 : i32
    %54 = arith.addi %53, %c1_i32_19 : i32
    %55 = arith.index_cast %54 : i32 to index
    %56 = memref.load %arg2[%55] : memref<32xf32, #tpu.memory_space<smem>>
    %57 = vector.broadcast %56 : f32 to vector<2x128xf32>
    %58 = arith.mulf %57, %31 : vector<2x128xf32>
    %59 = arith.addf %29, %58 : vector<2x128xf32>
    %c0_20 = arith.constant 0 : index
    %c2 = arith.constant 2 : index
    %c0_21 = arith.constant 0 : index
    %c0_22 = arith.constant 0 : index
    %60 = vector.load %arg3[%c0_20, %c2, %c0_21, %c0_22] : memref<1x4x2x128xf32, #tpu.memory_space<vmem>>, vector<1x1x2x128xf32>
    %61 = vector.shape_cast %60 : vector<1x1x2x128xf32> to vector<2x128xf32>
    %c0_i32_23 = arith.constant 0 : i32
    %62 = arith.addi %3, %c0_i32_23 : i32
    %c2_i32 = arith.constant 2 : i32
    %63 = arith.addi %62, %c2_i32 : i32
    %64 = arith.index_cast %63 : i32 to index
    %65 = memref.load %arg2[%64] : memref<32xf32, #tpu.memory_space<smem>>
    %66 = vector.broadcast %65 : f32 to vector<2x128xf32>
    %67 = arith.mulf %66, %61 : vector<2x128xf32>
    %68 = arith.addf %38, %67 : vector<2x128xf32>
    %c4_i32_24 = arith.constant 4 : i32
    %69 = arith.addi %3, %c4_i32_24 : i32
    %c2_i32_25 = arith.constant 2 : i32
    %70 = arith.addi %69, %c2_i32_25 : i32
    %71 = arith.index_cast %70 : i32 to index
    %72 = memref.load %arg2[%71] : memref<32xf32, #tpu.memory_space<smem>>
    %73 = vector.broadcast %72 : f32 to vector<2x128xf32>
    %74 = arith.mulf %73, %61 : vector<2x128xf32>
    %75 = arith.addf %45, %74 : vector<2x128xf32>
    %c8_i32_26 = arith.constant 8 : i32
    %76 = arith.addi %3, %c8_i32_26 : i32
    %c2_i32_27 = arith.constant 2 : i32
    %77 = arith.addi %76, %c2_i32_27 : i32
    %78 = arith.index_cast %77 : i32 to index
    %79 = memref.load %arg2[%78] : memref<32xf32, #tpu.memory_space<smem>>
    %80 = vector.broadcast %79 : f32 to vector<2x128xf32>
    %81 = arith.mulf %80, %61 : vector<2x128xf32>
    %82 = arith.addf %52, %81 : vector<2x128xf32>
    %c12_i32_28 = arith.constant 12 : i32
    %83 = arith.addi %3, %c12_i32_28 : i32
    %c2_i32_29 = arith.constant 2 : i32
    %84 = arith.addi %83, %c2_i32_29 : i32
    %85 = arith.index_cast %84 : i32 to index
    %86 = memref.load %arg2[%85] : memref<32xf32, #tpu.memory_space<smem>>
    %87 = vector.broadcast %86 : f32 to vector<2x128xf32>
    %88 = arith.mulf %87, %61 : vector<2x128xf32>
    %89 = arith.addf %59, %88 : vector<2x128xf32>
    %c0_30 = arith.constant 0 : index
    %c3 = arith.constant 3 : index
    %c0_31 = arith.constant 0 : index
    %c0_32 = arith.constant 0 : index
    %90 = vector.load %arg3[%c0_30, %c3, %c0_31, %c0_32] : memref<1x4x2x128xf32, #tpu.memory_space<vmem>>, vector<1x1x2x128xf32>
    %91 = vector.shape_cast %90 : vector<1x1x2x128xf32> to vector<2x128xf32>
    %c0_i32_33 = arith.constant 0 : i32
    %92 = arith.addi %3, %c0_i32_33 : i32
    %c3_i32 = arith.constant 3 : i32
    %93 = arith.addi %92, %c3_i32 : i32
    %94 = arith.index_cast %93 : i32 to index
    %95 = memref.load %arg2[%94] : memref<32xf32, #tpu.memory_space<smem>>
    %96 = vector.broadcast %95 : f32 to vector<2x128xf32>
    %97 = arith.mulf %96, %91 : vector<2x128xf32>
    %98 = arith.addf %68, %97 : vector<2x128xf32>
    %c4_i32_34 = arith.constant 4 : i32
    %99 = arith.addi %3, %c4_i32_34 : i32
    %c3_i32_35 = arith.constant 3 : i32
    %100 = arith.addi %99, %c3_i32_35 : i32
    %101 = arith.index_cast %100 : i32 to index
    %102 = memref.load %arg2[%101] : memref<32xf32, #tpu.memory_space<smem>>
    %103 = vector.broadcast %102 : f32 to vector<2x128xf32>
    %104 = arith.mulf %103, %91 : vector<2x128xf32>
    %105 = arith.addf %75, %104 : vector<2x128xf32>
    %c8_i32_36 = arith.constant 8 : i32
    %106 = arith.addi %3, %c8_i32_36 : i32
    %c3_i32_37 = arith.constant 3 : i32
    %107 = arith.addi %106, %c3_i32_37 : i32
    %108 = arith.index_cast %107 : i32 to index
    %109 = memref.load %arg2[%108] : memref<32xf32, #tpu.memory_space<smem>>
    %110 = vector.broadcast %109 : f32 to vector<2x128xf32>
    %111 = arith.mulf %110, %91 : vector<2x128xf32>
    %112 = arith.addf %82, %111 : vector<2x128xf32>
    %c12_i32_38 = arith.constant 12 : i32
    %113 = arith.addi %3, %c12_i32_38 : i32
    %c3_i32_39 = arith.constant 3 : i32
    %114 = arith.addi %113, %c3_i32_39 : i32
    %115 = arith.index_cast %114 : i32 to index
    %116 = memref.load %arg2[%115] : memref<32xf32, #tpu.memory_space<smem>>
    %117 = vector.broadcast %116 : f32 to vector<2x128xf32>
    %118 = arith.mulf %117, %91 : vector<2x128xf32>
    %119 = arith.addf %89, %118 : vector<2x128xf32>
    %c0_40 = arith.constant 0 : index
    %c0_41 = arith.constant 0 : index
    %c0_42 = arith.constant 0 : index
    %c0_43 = arith.constant 0 : index
    %120 = vector.load %arg4[%c0_40, %c0_41, %c0_42, %c0_43] : memref<1x4x2x128xf32, #tpu.memory_space<vmem>>, vector<1x1x2x128xf32>
    %121 = vector.shape_cast %120 : vector<1x1x2x128xf32> to vector<2x128xf32>
    %122 = vector.shape_cast %98 : vector<2x128xf32> to vector<1x1x2x128xf32>
    tpu.vector_store %arg4[%c0_40, %c0_41, %c0_42, %c0_43], %122 {strides = array<i32>} : memref<1x4x2x128xf32, #tpu.memory_space<vmem>>, vector<1x1x2x128xf32>,
    %c0_44 = arith.constant 0 : index
    %c1_45 = arith.constant 1 : index
    %c0_46 = arith.constant 0 : index
    %c0_47 = arith.constant 0 : index
    %123 = vector.load %arg4[%c0_44, %c1_45, %c0_46, %c0_47] : memref<1x4x2x128xf32, #tpu.memory_space<vmem>>, vector<1x1x2x128xf32>
    %124 = vector.shape_cast %123 : vector<1x1x2x128xf32> to vector<2x128xf32>
    %125 = vector.shape_cast %105 : vector<2x128xf32> to vector<1x1x2x128xf32>
    tpu.vector_store %arg4[%c0_44, %c1_45, %c0_46, %c0_47], %125 {strides = array<i32>} : memref<1x4x2x128xf32, #tpu.memory_space<vmem>>, vector<1x1x2x128xf32>,
    %c0_48 = arith.constant 0 : index
    %c2_49 = arith.constant 2 : index
    %c0_50 = arith.constant 0 : index
    %c0_51 = arith.constant 0 : index
    %126 = vector.load %arg4[%c0_48, %c2_49, %c0_50, %c0_51] : memref<1x4x2x128xf32, #tpu.memory_space<vmem>>, vector<1x1x2x128xf32>
    %127 = vector.shape_cast %126 : vector<1x1x2x128xf32> to vector<2x128xf32>
    %128 = vector.shape_cast %112 : vector<2x128xf32> to vector<1x1x2x128xf32>
    tpu.vector_store %arg4[%c0_48, %c2_49, %c0_50, %c0_51], %128 {strides = array<i32>} : memref<1x4x2x128xf32, #tpu.memory_space<vmem>>, vector<1x1x2x128xf32>,
    %c0_52 = arith.constant 0 : index
    %c3_53 = arith.constant 3 : index
    %c0_54 = arith.constant 0 : index
    %c0_55 = arith.constant 0 : index
    %129 = vector.load %arg4[%c0_52, %c3_53, %c0_54, %c0_55] : memref<1x4x2x128xf32, #tpu.memory_space<vmem>>, vector<1x1x2x128xf32>
    %130 = vector.shape_cast %129 : vector<1x1x2x128xf32> to vector<2x128xf32>
    %131 = vector.shape_cast %119 : vector<2x128xf32> to vector<1x1x2x128xf32>
    tpu.vector_store %arg4[%c0_52, %c3_53, %c0_54, %c0_55], %131 {strides = array<i32>} : memref<1x4x2x128xf32, #tpu.memory_space<vmem>>, vector<1x1x2x128xf32>,
    return
  }
  func.func @transform_0(%arg0: i32, %arg1: i32) -> i32 {
    %c0_i32 = arith.constant 0 : i32
    %c0_i32_0 = arith.constant 0 : i32
    return %c0_i32 : i32
  }
  func.func @transform_1(%arg0: i32, %arg1: i32) -> (i32, i32, i32, i32) {
    %c0_i32 = arith.constant 0 : i32
    %c0_i32_0 = arith.constant 0 : i32
    %c0_i32_1 = arith.constant 0 : i32
    return %arg0, %c0_i32, %arg1, %c0_i32_0 : i32, i32, i32, i32
  }
  func.func @transform_2(%arg0: i32, %arg1: i32) -> (i32, i32, i32, i32) {
    %c0_i32 = arith.constant 0 : i32
    %c0_i32_0 = arith.constant 0 : i32
    %c0_i32_1 = arith.constant 0 : i32
    return %arg0, %c0_i32, %arg1, %c0_i32_0 : i32, i32, i32, i32
  }
}

</mosaic_0001>

<llo_original>
// kernel: tpu_custom_call.1
$region0: #{tpu_custom_call.1}
  #allocation0 [shape = 'u32[]', space=smem, size = 0x4, offset = 0x4, fixed_abs, tag = 'smem constant byte address 0x4 - core index']
  #allocation1 [shape = 'u32[144,128]{1,0:T(1,128)}', space=vmem, size = 0x12000, scoped, tag = 'internal scratch']
  %s0 = inlined_call_operand.hbm [shape: f32[32], index: 0, kind: input, shape index: {}]
  %s1 = inlined_call_operand.hbm [shape: f32[2,4,2,128], index: 1, kind: input, shape index: {}]
  %s2 = inlined_call_operand.hbm [shape: f32[2,4,2,128], index: 2, kind: output, shape index: {}]
  %s3 = sld [smem:[#allocation0]]
  $region49: #{tpu_custom_call.1} parent=0
    _
  %s5 = ssub.s32 1, %s3
  %s6 = scalar_select 0, %s5, %s3
  $region1: #{tpu_custom_call.1} parent=0
    #allocation2 [shape = 'u8[512]{0}', space=smem, size = 0x200, scoped, tag = 'input window, operand 0, single buffered']
    #allocation3 [shape = 's32[2]{0}', space=sflag, size = 0x8, scoped, tag = 'scoped memory for tpu_custom_call.1']
    #allocation4 [shape = 's32[2]{0}', space=sflag, size = 0x8, scoped, tag = 'scoped memory for tpu_custom_call.1']
    #allocation5 [shape = 's32[2]{0}', space=sflag, size = 0x8, scoped, tag = 'scoped memory for tpu_custom_call.1']
    #allocation6 [shape = 'u8[8192]{0}', space=vmem, size = 0x2000, scoped, tag = 'input window, operand 1']
    #allocation7 [shape = 'u8[8192]{0}', space=vmem, size = 0x2000, scoped, tag = 'output window, operand 0']
    %7 = vsyncpa [#allocation5], 0
    %8 = vsyncpa [#allocation3], 0
    %s9 = scalar_lea.sflag [#allocation3], 1
    %10 = vsyncpa %s9, 0
    %11 = vsyncpa [#allocation4], 0
    %s12 = scalar_lea.sflag [#allocation4], 1
    %13 = vsyncpa %s12, 0
    loop: start=0, step=1, limit=4
    $region2: #{tpu_custom_call.1} parent=1 // loop_pre_header
      _
    $region3: #{tpu_custom_call.1} parent=1 // loop_header
      %s15 = sphi 0, %s19
      %p16 = scmp.ge.s32.totalorder %s15, 4
      %s22 = sphi 0, %s34
      %s23 = sphi 0, %s30
      %s24 = sphi 0, %s22
      %s25 = sphi 0, %s23
      %s26 = sphi 0, %s24
      %s27 = sphi 0, %s25
      %s35 = sphi 0, %s35
      %s37 = sphi 0, %s35
      %s38 = sphi 0, %s37
      %s52 = sphi 0, %s38
      %s60 = sphi 0, %s62
      %s63 = sphi 0, %s60
      %s64 = sphi 0, %s63
      %s80 = sphi 0, %s64
      %s88 = sphi 0, %s90
      %s91 = sphi 0, %s88
      %s92 = sphi 0, %s91
      %s108 = sphi 0, %s92
    $region4: #{tpu_custom_call.1} parent=1 // loop_header_branch
      %18 = sbr.rel (%p16) target = $region8
    $region5: #{tpu_custom_call.1} parent=1 // loop_body
      %s20 = ssub.s32 %s15, 1
      %s21 = ssub.s32 %s15, 2
      %s28 = sadd.s32 1, %s23
      %p29 = scmp.ge.s32.totalorder %s28, 1
      %s30 = scalar_select %p29, 0, %s28
      %s31 = sadd.s32 1, %s22
      %s32 = scalar_select %p29, %s31, %s22
      %p33 = scmp.ge.s32.totalorder %s32, 2
      %s34 = scalar_select %p33, 0, %s32
      %s36 = sadd.s32 %s35, 1
      %p39 = scmp.eq.s32.totalorder %s15, 1
      %p40 = scmp.ne.s32.totalorder %s35, %s37
      %p41 = scmp.eq.s32.totalorder %s15, 0
      %p42 = por %p40, %p41
      %p43 = scmp.ne.s32.totalorder %s35, %s37
      %p44 = scmp.eq.s32.totalorder %s20, 1
      %p45 = por %p43, %p44
      %p46 = scmp.ne.s32.totalorder %s37, %s38
      %p47 = scmp.eq.s32.totalorder %s20, 0
      %p48 = por %p46, %p47
      %p49 = scmp.ne.s32.totalorder %s37, %s38
      %p50 = scmp.eq.s32.totalorder %s21, 1
      %p51 = por %p49, %p50
      %p53 = scmp.ne.s32.totalorder %s38, %s52
      %p54 = scmp.eq.s32.totalorder %s21, 0
      %p55 = por %p53, %p54
      %s56 = ssub.s32 %s22, %s34
      %s57 = ssub.s32 %s23, %s30
      %s58 = sor.u32 %s56, %s57
      %p59 = scmp.eq.s32.totalorder %s58, 0
      %s61 = sadd.s32 %s60, 1
      %s62 = scalar_select %p59, %s60, %s61
      %p65 = pneg %p59
      %p66 = scmp.eq.s32.totalorder %s15, 1
      %p67 = por %p65, %p66
      %p68 = scmp.ne.s32.totalorder %s60, %s63
      %p69 = scmp.eq.s32.totalorder %s15, 0
      %p70 = por %p68, %p69
      %p71 = scmp.ne.s32.totalorder %s60, %s63
      %p72 = scmp.eq.s32.totalorder %s20, 1
      %p73 = por %p71, %p72
      %p74 = scmp.ne.s32.totalorder %s63, %s64
      %p75 = scmp.eq.s32.totalorder %s20, 0
      %p76 = por %p74, %p75
      %p77 = scmp.ne.s32.totalorder %s63, %s64
      %p78 = scmp.eq.s32.totalorder %s21, 1
      %p79 = por %p77, %p78
      %p81 = scmp.ne.s32.totalorder %s64, %s80
      %p82 = scmp.eq.s32.totalorder %s21, 0
      %p83 = por %p81, %p82
      %s84 = ssub.s32 %s22, %s34
      %s85 = ssub.s32 %s23, %s30
      %s86 = sor.u32 %s84, %s85
      %p87 = scmp.eq.s32.totalorder %s86, 0
      %s89 = sadd.s32 %s88, 1
      %s90 = scalar_select %p87, %s88, %s89
      %p93 = pneg %p87
      %p94 = scmp.eq.s32.totalorder %s15, 1
      %p95 = por %p93, %p94
      %p96 = scmp.ne.s32.totalorder %s88, %s91
      %p97 = scmp.eq.s32.totalorder %s15, 0
      %p98 = por %p96, %p97
      %p99 = scmp.ne.s32.totalorder %s88, %s91
      %p100 = scmp.eq.s32.totalorder %s20, 1
      %p101 = por %p99, %p100
      %p102 = scmp.ne.s32.totalorder %s91, %s92
      %p103 = scmp.eq.s32.totalorder %s20, 0
      %p104 = por %p102, %p103
      %p105 = scmp.ne.s32.totalorder %s91, %s92
      %p106 = scmp.eq.s32.totalorder %s21, 1
      %p107 = por %p105, %p106
      %p109 = scmp.ne.s32.totalorder %s92, %s108
      %p110 = scmp.eq.s32.totalorder %s21, 0
      %p111 = por %p109, %p110
      %p112 = scmp.le.s32.totalorder 1, %s15
      %p113 = scmp.lt.s32.totalorder %s15, 3
      %p114 = pnand %p112, %p113
      %p115 = pneg %p114
      // Predicated region
      $region9: #{tpu_custom_call.1} parent=5 // pred_check
        _
      $region10: #{tpu_custom_call.1} parent=5 // pred_check_branch
        %117 = sbr.rel (%p114) target = $region12
      $region11: #{tpu_custom_call.1} parent=5 // pred_region
        %s118 = ssub.s32 %s15, 1
        // Predicated region
        $region13: #{tpu_custom_call.1} parent=11 // pred_check
          %p119 = pneg %p48
        $region14: #{tpu_custom_call.1} parent=11 // pred_check_branch
          %121 = sbr.rel (%p119) target = $region16
        $region15: #{tpu_custom_call.1} parent=11 // pred_region
          %s123 = ssub.s32 16, 16
          %124 = vsyncadd [#allocation5], %s123
          %127 = dma.hbm_to_smem %s0, 16, [#allocation2], [#allocation5]
        $region16: #{tpu_custom_call.1} parent=11 // pred_fallthru
          _
      $region12: #{tpu_custom_call.1} parent=5 // pred_fallthru
        _
      %p128 = scmp.lt.s32.totalorder %s15, 2
      // Predicated region
      $region17: #{tpu_custom_call.1} parent=5 // pred_check
        %p129 = pneg %p128
      $region18: #{tpu_custom_call.1} parent=5 // pred_check_branch
        %131 = sbr.rel (%p129) target = $region20
      $region19: #{tpu_custom_call.1} parent=5 // pred_region
        // Predicated region
        $region21: #{tpu_custom_call.1} parent=19 // pred_check
          %p132 = pneg %p70
        $region22: #{tpu_custom_call.1} parent=19 // pred_check_branch
          %134 = sbr.rel (%p132) target = $region24
        $region23: #{tpu_custom_call.1} parent=19 // pred_region
          %s135 = sand.u32 %s60, 1
          %s136 = scalar_lea.sflag [#allocation3], %s135
          %s137 = sand.u32 %s60, 1
          %s138 = smul.addr %s137, 8
          %s139 = scalar_lea.vmem [#allocation6], %s138
          %s141 = ssub.s32 128, 128
          %142 = vsyncadd %s136, %s141
          %s143 = smul.addr %s22, 4
          %s144 = sadd.s32 %s23, %s143
          %s145 = smul.addr %s144, 32
          %s146 = scalar_lea.hbm %s1, %s145
          %s147 = sshll.u32 %s139, 4
          %s148 = int_to_ptr.vmem [resolvable:$true] %s147
          %153 = dma.hbm_to_vmem [thread:$0]  %s146, 128, %s148, %s136, 32, 32, 2
        $region24: #{tpu_custom_call.1} parent=19 // pred_fallthru
          _
      $region20: #{tpu_custom_call.1} parent=5 // pred_fallthru
        _
      %p154 = scmp.le.s32.totalorder 1, %s15
      %p155 = scmp.lt.s32.totalorder %s15, 3
      %p156 = pnand %p154, %p155
      %p157 = pneg %p156
      // Predicated region
      $region25: #{tpu_custom_call.1} parent=5 // pred_check
        _
      $region26: #{tpu_custom_call.1} parent=5 // pred_check_branch
        %159 = sbr.rel (%p156) target = $region28
      $region27: #{tpu_custom_call.1} parent=5 // pred_region
        %s160 = ssub.s32 %s15, 1
        // Predicated region
        $region29: #{tpu_custom_call.1} parent=27 // pred_check
          %p161 = pneg %p48
        $region30: #{tpu_custom_call.1} parent=27 // pred_check_branch
          %163 = sbr.rel (%p161) target = $region32
        $region31: #{tpu_custom_call.1} parent=27 // pred_region
          %164 = dma.done [#allocation5], 16
        $region32: #{tpu_custom_call.1} parent=27 // pred_fallthru
          _
        %s165 = sand.u32 %s63, 1
        %s166 = scalar_lea.sflag [#allocation3], %s165
        %s167 = sand.u32 %s63, 1
        %s168 = smul.addr %s167, 8
        %s169 = scalar_lea.vmem [#allocation6], %s168
        // Predicated region
        $region33: #{tpu_custom_call.1} parent=27 // pred_check
          %p170 = pneg %p76
        $region34: #{tpu_custom_call.1} parent=27 // pred_check_branch
          %172 = sbr.rel (%p170) target = $region36
        $region35: #{tpu_custom_call.1} parent=27 // pred_region
          %173 = dma.done %s166, 128
        $region36: #{tpu_custom_call.1} parent=27 // pred_fallthru
          _
        %174 = sfence
        %p175 = pneg %p48
        %p176 = pneg %p45
        %s177 = sand.u32 %s63, 1
        %s178 = scalar_lea.sflag [#allocation3], %s177
        %s179 = sand.u32 %s63, 1
        %s180 = smul.addr %s179, 8
        %s181 = scalar_lea.vmem [#allocation6], %s180
        %p182 = pneg %p76
        %p183 = pneg %p73
        %p184 = pneg %p104
        %p185 = pneg %p101
        %s186 = sand.u32 %s91, 1
        %s187 = scalar_lea.sflag [#allocation4], %s186
        %s188 = sand.u32 %s91, 1
        %s189 = smul.addr %s188, 8
        %s190 = scalar_lea.vmem [#allocation7], %s189
        %p191 = scmp.lt.s32.totalorder %s24, 1
        %s192 = scalar_select %p191, %s24, 1
        %s193 = smul.u32 %s192, 16
        %v194 = vld [vmem:[%s169] sm:$0x3]
        %s195 = sld [smem:[#allocation2 + %s193]]
        %v196 = vstv %s195
        %v197 = vmul.f32 %v196, %v194
        %s198 = sadd.s32 %s193, 4
        %s199 = sld [smem:[#allocation2 + %s198]]
        %v200 = vstv %s199
        %v201 = vmul.f32 %v200, %v194
        %s202 = sadd.s32 %s193, 8
        %s203 = sld [smem:[#allocation2 + %s202]]
        %v204 = vstv %s203
        %v205 = vmul.f32 %v204, %v194
        %s206 = sadd.s32 %s193, 12
        %s207 = sld [smem:[#allocation2 + %s206]]
        %v208 = vstv %s207
        %v209 = vmul.f32 %v208, %v194
        %s210 = scalar_lea.vmem %s169, 2 [#allocation6]
        %v211 = vld [vmem:[%s210] sm:$0x3]
        %s212 = sadd.s32 %s193, 1
        %s213 = sld [smem:[#allocation2 + %s212]]
        %v214 = vstv %s213
        %v215 = vmul.f32 %v214, %v211
        %v216 = vadd.f32 %v197, %v215
        %s217 = sadd.s32 %s193, 5
        %s218 = sld [smem:[#allocation2 + %s217]]
        %v219 = vstv %s218
        %v220 = vmul.f32 %v219, %v211
        %v221 = vadd.f32 %v201, %v220
        %s222 = sadd.s32 %s193, 9
        %s223 = sld [smem:[#allocation2 + %s222]]
        %v224 = vstv %s223
        %v225 = vmul.f32 %v224, %v211
        %v226 = vadd.f32 %v205, %v225
        %s227 = sadd.s32 %s193, 13
        %s228 = sld [smem:[#allocation2 + %s227]]
        %v229 = vstv %s228
        %v230 = vmul.f32 %v229, %v211
        %v231 = vadd.f32 %v209, %v230
        %s232 = scalar_lea.vmem %s169, 4 [#allocation6]
        %v233 = vld [vmem:[%s232] sm:$0x3]
        %s234 = sadd.s32 %s193, 2
        %s235 = sld [smem:[#allocation2 + %s234]]
        %v236 = vstv %s235
        %v237 = vmul.f32 %v236, %v233
        %v238 = vadd.f32 %v216, %v237
        %s239 = sadd.s32 %s193, 6
        %s240 = sld [smem:[#allocation2 + %s239]]
        %v241 = vstv %s240
        %v242 = vmul.f32 %v241, %v233
        %v243 = vadd.f32 %v221, %v242
        %s244 = sadd.s32 %s193, 10
        %s245 = sld [smem:[#allocation2 + %s244]]
        %v246 = vstv %s245
        %v247 = vmul.f32 %v246, %v233
        %v248 = vadd.f32 %v226, %v247
        %s249 = sadd.s32 %s193, 14
        %s250 = sld [smem:[#allocation2 + %s249]]
        %v251 = vstv %s250
        %v252 = vmul.f32 %v251, %v233
        %v253 = vadd.f32 %v231, %v252
        %s254 = scalar_lea.vmem %s169, 6 [#allocation6]
        %v255 = vld [vmem:[%s254] sm:$0x3]
        %s256 = sadd.s32 %s193, 3
        %s257 = sld [smem:[#allocation2 + %s256]]
        %v258 = vstv %s257
        %v259 = vmul.f32 %v258, %v255
        %v260 = vadd.f32 %v238, %v259
        %s261 = sadd.s32 %s193, 7
        %s262 = sld [smem:[#allocation2 + %s261]]
        %v263 = vstv %s262
        %v264 = vmul.f32 %v263, %v255
        %v265 = vadd.f32 %v243, %v264
        %s266 = sadd.s32 %s193, 11
        %s267 = sld [smem:[#allocation2 + %s266]]
        %v268 = vstv %s267
        %v269 = vmul.f32 %v268, %v255
        %v270 = vadd.f32 %v248, %v269
        %s271 = sadd.s32 %s193, 15
        %s272 = sld [smem:[#allocation2 + %s271]]
        %v273 = vstv %s272
        %v274 = vmul.f32 %v273, %v255
        %v275 = vadd.f32 %v253, %v274
        %276 = vst [vmem:[%s190] sm:$0x3] %v260
        %s277 = scalar_lea.vmem %s190, 2 [#allocation7]
        %278 = vst [vmem:[%s277] sm:$0x3] %v265
        %s279 = scalar_lea.vmem %s190, 4 [#allocation7]
        %280 = vst [vmem:[%s279] sm:$0x3] %v270
        %s281 = scalar_lea.vmem %s190, 6 [#allocation7]
        %282 = vst [vmem:[%s281] sm:$0x3] %v275
        %s283 = sand.u32 %s91, 1
        %s284 = scalar_lea.sflag [#allocation4], %s283
        %s285 = sand.u32 %s91, 1
        %s286 = smul.addr %s285, 8
        %s287 = scalar_lea.vmem [#allocation7], %s286
        // Predicated region
        $region37: #{tpu_custom_call.1} parent=27 // pred_check
          %p288 = pneg %p101
        $region38: #{tpu_custom_call.1} parent=27 // pred_check_branch
          %290 = sbr.rel (%p288) target = $region40
        $region39: #{tpu_custom_call.1} parent=27 // pred_region
          %s292 = ssub.s32 128, 128
          %293 = vsyncadd %s284, %s292
          %s294 = smul.addr %s24, 4
          %s295 = sadd.s32 %s25, %s294
          %s296 = smul.addr %s295, 32
          %s297 = scalar_lea.hbm %s2, %s296
          %s298 = sshll.u32 %s287, 4
          %s299 = int_to_ptr.vmem [resolvable:$true] %s298
          %304 = dma.vmem_to_hbm [thread:$0]  %s299, 128, %s297, %s284, 32, 32, 2
        $region40: #{tpu_custom_call.1} parent=27 // pred_fallthru
          _
      $region28: #{tpu_custom_call.1} parent=5 // pred_fallthru
        _
      %p305 = scmp.le.s32.totalorder 2, %s15
      // Predicated region
      $region41: #{tpu_custom_call.1} parent=5 // pred_check
        %p306 = pneg %p305
      $region42: #{tpu_custom_call.1} parent=5 // pred_check_branch
        %308 = sbr.rel (%p306) target = $region44
      $region43: #{tpu_custom_call.1} parent=5 // pred_region
        %s309 = ssub.s32 %s15, 2
        // Predicated region
        $region45: #{tpu_custom_call.1} parent=43 // pred_check
          %p310 = pneg %p107
        $region46: #{tpu_custom_call.1} parent=43 // pred_check_branch
          %312 = sbr.rel (%p310) target = $region48
        $region47: #{tpu_custom_call.1} parent=43 // pred_region
          %s313 = sand.u32 %s92, 1
          %s314 = scalar_lea.sflag [#allocation4], %s313
          %s315 = sand.u32 %s92, 1
          %s316 = smul.addr %s315, 8
          %s317 = scalar_lea.vmem [#allocation7], %s316
          %318 = dma.done %s314, 128
        $region48: #{tpu_custom_call.1} parent=43 // pred_fallthru
          _
      $region44: #{tpu_custom_call.1} parent=5 // pred_fallthru
        _
    $region6: #{tpu_custom_call.1} parent=1 // loop_footer
      %s19 = sadd.s32 1, %s15
    $region7: #{tpu_custom_call.1} parent=1 // loop_footer_branch
      %14 = sbr.rel target = $region3
    $region8: #{tpu_custom_call.1} parent=1 // loop_exit
      _
    %319 = vsyncpa [#allocation3], 1
    %s320 = scalar_lea.sflag [#allocation3], 1
    %321 = vsyncpa %s320, 1
    %322 = vsyncpa [#allocation4], 1
    %s323 = scalar_lea.sflag [#allocation4], 1
    %324 = vsyncpa %s323, 1
    %325 = vsyncpa [#allocation5], 1
    %s326 = scalar_lea.sflag [#allocation5], 1
    %327 = vsyncpa %s326, 1

</llo_original>
